<compile_context>
chip_gen: v6e
topology: v6e:2x2x1
jax: 0.10.0
libtpu: 0.0.40
codegen_flags: <defaults>
</compile_context>

<pallas_src>
import jax
import jax.numpy as jnp
from jax.experimental import pallas as pl
from jax.experimental.pallas import tpu as pltpu

Z_DIM = 64
HIDDEN = 256
IMG_DIM = 28 * 28 * 1  # 784


def _round_up(n, m):
    return ((n + m - 1) // m) * m


def _generator_kernel(x_ref, w1_ref, b1_ref, w2_ref, b2_ref, o_ref):
    # First linear layer: (TB, z) @ (z, 256) in bf16, accumulate in f32.
    x = x_ref[...].astype(jnp.bfloat16)
    h = jnp.dot(x, w1_ref[...], preferred_element_type=jnp.float32)
    h = h + b1_ref[...]                      # broadcast (1, 256) over batch
    # LeakyReLU(negative_slope=0.01)
    h = jnp.where(h >= 0, h, 0.01 * h)
    # Second linear layer: (TB, 256) @ (256, 784) in bf16, accumulate in f32.
    y = jnp.dot(h.astype(jnp.bfloat16), w2_ref[...],
                preferred_element_type=jnp.float32)
    y = y + b2_ref[...]
    # Tanh output activation (EUP)
    o_ref[...] = jnp.tanh(y).astype(o_ref.dtype)


def generator_forward(x, w1, b1, w2, b2, *, block_b=256):
    """x: (B, Z_DIM) float32 -> (B, IMG_DIM) float32."""
    B = x.shape[0]

    # bf16 weights: halves the dominant HBM->VMEM weight traffic.
    w1_bf = w1.astype(jnp.bfloat16)
    w2_bf = w2.astype(jnp.bfloat16)
    b1_f = b1.astype(jnp.float32).reshape(1, HIDDEN)
    b2_f = b2.astype(jnp.float32).reshape(1, IMG_DIM)

    # Batch tile: fill the MXU (256 rows) at large B; 8-aligned tile otherwise.
    tb = block_b if B >= block_b else max(8, _round_up(B, 8))
    padded_b = _round_up(B, tb)
    if padded_b != B:
        x = jnp.pad(x, ((0, padded_b - B), (0, 0)))

    grid = (padded_b // tb,)

    out = pl.pallas_call(
        _generator_kernel,
        out_shape=jax.ShapeDtypeStruct((padded_b, IMG_DIM), jnp.float32),
        grid_spec=pltpu.PrefetchScalarGridSpec(
            num_scalar_prefetch=0,
            grid=grid,
            in_specs=[
                # Batch-tiled activations.
                pl.BlockSpec((tb, Z_DIM), lambda i: (i, 0)),
                # Weights / biases: constant block index -> VMEM-resident
                # across all grid steps (no re-DMA per batch tile).
                pl.BlockSpec((Z_DIM, HIDDEN), lambda i: (0, 0)),
                pl.BlockSpec((1, HIDDEN), lambda i: (0, 0)),
                pl.BlockSpec((HIDDEN, IMG_DIM), lambda i: (0, 0)),
                pl.BlockSpec((1, IMG_DIM), lambda i: (0, 0)),
            ],
            out_specs=pl.BlockSpec((tb, IMG_DIM), lambda i: (i, 0)),
        ),
        compiler_params=pltpu.CompilerParams(
            # Batch tiles are independent -> megacore sharding on v7x.
            dimension_semantics=("parallel",),
        ),
    )(x, w1_bf, b1_f, w2_bf, b2_f)

    return out[:B]


def init_params(key):
    """PyTorch nn.Linear default init: U(-1/sqrt(fan_in), 1/sqrt(fan_in))."""
    k1, k2, k3, k4 = jax.random.split(key, 4)
    bound1 = 1.0 / jnp.sqrt(Z_DIM)
    bound2 = 1.0 / jnp.sqrt(HIDDEN)
    w1 = jax.random.uniform(k1, (Z_DIM, HIDDEN), jnp.float32, -bound1, bound1)
    b1 = jax.random.uniform(k2, (HIDDEN,), jnp.float32, -bound1, bound1)
    w2 = jax.random.uniform(k3, (HIDDEN, IMG_DIM), jnp.float32, -bound2, bound2)
    b2 = jax.random.uniform(k4, (IMG_DIM,), jnp.float32, -bound2, bound2)
    return w1, b1, w2, b2


def reference_forward(x, w1, b1, w2, b2):
    """Mirrors the kernel's bf16-operand / f32-accumulate path for a tight check."""
    xb = x.astype(jnp.bfloat16)
    w1b = w1.astype(jnp.bfloat16)
    w2b = w2.astype(jnp.bfloat16)
    h = jnp.dot(xb, w1b, preferred_element_type=jnp.float32) + b1.reshape(1, -1)
    h = jnp.where(h >= 0, h, 0.01 * h)
    y = jnp.dot(h.astype(jnp.bfloat16), w2b,
                preferred_element_type=jnp.float32) + b2.reshape(1, -1)
    return jnp.tanh(y)


if __name__ == "__main__":
    key = jax.random.PRNGKey(0)
    k_params, k_x1, k_x2 = jax.random.split(key, 3)
    w1, b1, w2, b2 = init_params(k_params)

    # Small batch (single grid step, 8-aligned tile).
    B_small = 8
    x_small = jax.random.normal(k_x1, (B_small, Z_DIM), dtype=jnp.float32)
    out_small = jax.block_until_ready(generator_forward(x_small, w1, b1, w2, b2))
    ref_small = reference_forward(x_small, w1, b1, w2, b2)
    assert out_small.shape == (B_small, IMG_DIM), out_small.shape
    assert jnp.allclose(out_small, ref_small, atol=2e-2, rtol=0), "small-batch mismatch"

    # Non-multiple batch: exercises batch padding + multi-step grid with
    # VMEM-resident weights and the parallel batch axis.
    B_big = 300
    x_big = jax.random.normal(k_x2, (B_big, Z_DIM), dtype=jnp.float32)
    out_big = jax.block_until_ready(generator_forward(x_big, w1, b1, w2, b2))
    ref_big = reference_forward(x_big, w1, b1, w2, b2)
    assert out_big.shape == (B_big, IMG_DIM), out_big.shape
    assert jnp.allclose(out_big, ref_big, atol=2e-2, rtol=0), "big-batch mismatch"

    print("KERNEL_OK")
</pallas_src>

<mosaic_0001>
module attributes {stable_mosaic.version = 11 : i64} {
  func.func @_generator_kernel(%arg0: i32, %arg1: memref<8x64xf32, #tpu.memory_space<vmem>>, %arg2: memref<64x256xbf16, #tpu.memory_space<vmem>>, %arg3: memref<1x256xf32, #tpu.memory_space<vmem>>, %arg4: memref<256x784xbf16, #tpu.memory_space<vmem>>, %arg5: memref<1x784xf32, #tpu.memory_space<vmem>>, %arg6: memref<8x784xf32, #tpu.memory_space<vmem>>) attributes {dimension_semantics = [#tpu.dimension_semantics<parallel>], iteration_bounds = array<i64: 1>, scalar_prefetch = 0 : i64, scratch_operands = 0 : i64, tpu.core_type = #tpu.core_type<tc>, window_params = [{transform_indices = @transform_0, window_bounds = array<i64: 8, 64>}, {pipeline_mode = #tpu.pipeline_mode<synchronous>, transform_indices = @transform_1, window_bounds = array<i64: 64, 256>}, {pipeline_mode = #tpu.pipeline_mode<synchronous>, transform_indices = @transform_2, window_bounds = array<i64: 1, 256>}, {pipeline_mode = #tpu.pipeline_mode<synchronous>, transform_indices = @transform_3, window_bounds = array<i64: 256, 784>}, {pipeline_mode = #tpu.pipeline_mode<synchronous>, transform_indices = @transform_4, window_bounds = array<i64: 1, 784>}, {transform_indices = @transform_5, window_bounds = array<i64: 8, 784>}]} {
    %c0 = arith.constant 0 : index
    %c0_0 = arith.constant 0 : index
    %0 = vector.load %arg1[%c0, %c0_0] : memref<8x64xf32, #tpu.memory_space<vmem>>, vector<8x64xf32>
    %1 = arith.truncf %0 : vector<8x64xf32> to vector<8x64xbf16>
    %c0_1 = arith.constant 0 : index
    %c0_2 = arith.constant 0 : index
    %2 = vector.load %arg2[%c0_1, %c0_2] : memref<64x256xbf16, #tpu.memory_space<vmem>>, vector<64x256xbf16>
    %cst = arith.constant dense<0.000000e+00> : vector<8x256xf32>
    %3 = tpu.matmul %1, %2, %cst {dimension_numbers = #tpu.dot_dimension_numbers<[1], [0], [0], [1], [0, 0, 1, 1], [], []>} : vector<8x64xbf16>, vector<64x256xbf16>, vector<8x256xf32> -> vector<8x256xf32>
    %c0_3 = arith.constant 0 : index
    %c0_4 = arith.constant 0 : index
    %4 = vector.load %arg3[%c0_3, %c0_4] : memref<1x256xf32, #tpu.memory_space<vmem>>, vector<1x256xf32>
    %5 = vector.broadcast %4 : vector<1x256xf32> to vector<8x256xf32>
    %6 = arith.addf %3, %5 : vector<8x256xf32>
    %cst_5 = arith.constant 0.000000e+00 : f32
    %7 = vector.broadcast %cst_5 : f32 to vector<8x256xf32>
    %8 = arith.cmpf oge, %6, %7 : vector<8x256xf32>
    %cst_6 = arith.constant 0.00999999977 : f32
    %9 = vector.broadcast %cst_6 : f32 to vector<8x256xf32>
    %10 = arith.mulf %9, %6 : vector<8x256xf32>
    %11 = arith.select %8, %6, %10 : vector<8x256xi1>, vector<8x256xf32>
    %12 = arith.truncf %11 : vector<8x256xf32> to vector<8x256xbf16>
    %c0_7 = arith.constant 0 : index
    %c0_8 = arith.constant 0 : index
    %13 = vector.load %arg4[%c0_7, %c0_8] : memref<256x784xbf16, #tpu.memory_space<vmem>>, vector<256x784xbf16>
    %cst_9 = arith.constant dense<0.000000e+00> : vector<8x784xf32>
    %14 = tpu.matmul %12, %13, %cst_9 {dimension_numbers = #tpu.dot_dimension_numbers<[1], [0], [0], [1], [0, 0, 1, 1], [], []>} : vector<8x256xbf16>, vector<256x784xbf16>, vector<8x784xf32> -> vector<8x784xf32>
    %c0_10 = arith.constant 0 : index
    %c0_11 = arith.constant 0 : index
    %15 = vector.load %arg5[%c0_10, %c0_11] : memref<1x784xf32, #tpu.memory_space<vmem>>, vector<1x784xf32>
    %16 = vector.broadcast %15 : vector<1x784xf32> to vector<8x784xf32>
    %17 = arith.addf %14, %16 : vector<8x784xf32>
    %18 = math.tanh %17 : vector<8x784xf32>
    %c0_12 = arith.constant 0 : index
    %c0_13 = arith.constant 0 : index
    %19 = vector.load %arg6[%c0_12, %c0_13] : memref<8x784xf32, #tpu.memory_space<vmem>>, vector<8x784xf32>
    tpu.vector_store %arg6[%c0_12, %c0_13], %18 {strides = array<i32>} : memref<8x784xf32, #tpu.memory_space<vmem>>, vector<8x784xf32>,
    return
  }
  func.func @transform_0(%arg0: i32) -> (i32, i32) {
    %c0_i32 = arith.constant 0 : i32
    %c0_i32_0 = arith.constant 0 : i32
    return %arg0, %c0_i32 : i32, i32
  }
  func.func @transform_1(%arg0: i32) -> (i32, i32) {
    %c0_i32 = arith.constant 0 : i32
    %c0_i32_0 = arith.constant 0 : i32
    %c0_i32_1 = arith.constant 0 : i32
    return %c0_i32, %c0_i32_0 : i32, i32
  }
  func.func @transform_2(%arg0: i32) -> (i32, i32) {
    %c0_i32 = arith.constant 0 : i32
    %c0_i32_0 = arith.constant 0 : i32
    %c0_i32_1 = arith.constant 0 : i32
    return %c0_i32, %c0_i32_0 : i32, i32
  }
  func.func @transform_3(%arg0: i32) -> (i32, i32) {
    %c0_i32 = arith.constant 0 : i32
    %c0_i32_0 = arith.constant 0 : i32
    %c0_i32_1 = arith.constant 0 : i32
    return %c0_i32, %c0_i32_0 : i32, i32
  }
  func.func @transform_4(%arg0: i32) -> (i32, i32) {
    %c0_i32 = arith.constant 0 : i32
    %c0_i32_0 = arith.constant 0 : i32
    %c0_i32_1 = arith.constant 0 : i32
    return %c0_i32, %c0_i32_0 : i32, i32
  }
  func.func @transform_5(%arg0: i32) -> (i32, i32) {
    %c0_i32 = arith.constant 0 : i32
    %c0_i32_0 = arith.constant 0 : i32
    return %arg0, %c0_i32 : i32, i32
  }
}

</mosaic_0001>

<llo_original>
// kernel: tpu_custom_call.1
$region0: #{tpu_custom_call.1}
  #allocation0 [shape = 'u32[]', space=smem, size = 0x4, offset = 0x4, fixed_abs, tag = 'smem constant byte address 0x4 - core index']
  #allocation1 [shape = 'u32[144,128]{1,0:T(1,128)}', space=vmem, size = 0x12000, scoped, tag = 'internal scratch']
  %s0 = inlined_call_operand.vmem [shape: f32[8,64], index: 0, kind: input, shape index: {}]
  %s1 = inlined_call_operand.vmem [shape: bf16[64,256], index: 1, kind: input, shape index: {}]
  %s2 = inlined_call_operand.vmem [shape: f32[1,256], index: 2, kind: input, shape index: {}]
  %s3 = inlined_call_operand.vmem [shape: bf16[256,784], index: 3, kind: input, shape index: {}]
  %s4 = inlined_call_operand.vmem [shape: f32[1,784], index: 4, kind: input, shape index: {}]
  %s5 = inlined_call_operand.hbm [shape: f32[8,784], index: 5, kind: output, shape index: {}]
  %s6 = sld [smem:[#allocation0]]
  $region30: #{tpu_custom_call.1} parent=0
    _
  %s8 = ssub.s32 1, %s6
  %s9 = scalar_select 0, %s8, %s6
  $region1: #{tpu_custom_call.1} parent=0
    #allocation2 [shape = 'u8[28672]{0}', space=vmem, size = 0x7000, scoped, tag = 'output window, operand 0, single buffered']
    #allocation3 [shape = 's32[1]{0}', space=sflag, size = 0x4, scoped, tag = 'scoped memory for tpu_custom_call.1']
    %10 = vsyncpa [#allocation3], 0
    // Predicated region
    $region2: #{tpu_custom_call.1} parent=1 // pred_check
      _
    $region3: #{tpu_custom_call.1} parent=1 // pred_check_branch
      %12 = sbr.rel (0) target = $region5
    $region4: #{tpu_custom_call.1} parent=1 // pred_region
      _
    $region5: #{tpu_custom_call.1} parent=1 // pred_fallthru
      _
    // Predicated region
    $region6: #{tpu_custom_call.1} parent=1 // pred_check
      _
    $region7: #{tpu_custom_call.1} parent=1 // pred_check_branch
      %14 = sbr.rel (0) target = $region9
    $region8: #{tpu_custom_call.1} parent=1 // pred_region
      _
    $region9: #{tpu_custom_call.1} parent=1 // pred_fallthru
      _
    // Predicated region
    $region10: #{tpu_custom_call.1} parent=1 // pred_check
      _
    $region11: #{tpu_custom_call.1} parent=1 // pred_check_branch
      %16 = sbr.rel (0) target = $region13
    $region12: #{tpu_custom_call.1} parent=1 // pred_region
      _
    $region13: #{tpu_custom_call.1} parent=1 // pred_fallthru
      _
    // Predicated region
    $region14: #{tpu_custom_call.1} parent=1 // pred_check
      _
    $region15: #{tpu_custom_call.1} parent=1 // pred_check_branch
      %18 = sbr.rel (0) target = $region17
    $region16: #{tpu_custom_call.1} parent=1 // pred_region
      _
    $region17: #{tpu_custom_call.1} parent=1 // pred_fallthru
      _
    // Predicated region
    $region18: #{tpu_custom_call.1} parent=1 // pred_check
      _
    $region19: #{tpu_custom_call.1} parent=1 // pred_check_branch
      %20 = sbr.rel (0) target = $region21
    $region20: #{tpu_custom_call.1} parent=1 // pred_region
      _
    $region21: #{tpu_custom_call.1} parent=1 // pred_fallthru
      _
    %v22 = vld [vmem:[%s0] sm:$0xff]
    %v23 = vpack.c.bf16 %v22, %v22
    %v24 = vld [vmem:[%s1] sm:$0xff]
    %v25 = vld [vmem:[%s1 + $0x8] sm:$0xff]
    %v26 = vld [vmem:[%s1 + $0x10] sm:$0xff]
    %v27 = vld [vmem:[%s1 + $0x18] sm:$0xff]
    %v28 = vld [vmem:[%s1 + $0x20] sm:$0xff]
    %v29 = vld [vmem:[%s1 + $0x28] sm:$0xff]
    %v30 = vld [vmem:[%s1 + $0x30] sm:$0xff]
    %v31 = vld [vmem:[%s1 + $0x38] sm:$0xff]
    %v32 = vld [vmem:[%s2] sm:$0x3]
    %v34 = vlaneseq
    %v35 = vshrl.u32 %v34, 7
    %v36 = vsub.s32 0, %v35
    %v37 = vrot.slane %v32, %v36
    %v38 = vlaneseq
    %v39 = vshrl.u32 %v38, 7
    %v40 = vsub.s32 1, %v39
    %v41 = vrot.slane %v32, %v40
    %v52 = vunpack.c.l.b16 %v24
    %v53 = vunpack.c.h.b16 %v24
    %v54 = vunpack.c.l.b16 %v25
    %v55 = vunpack.c.h.b16 %v25
    %v56 = vunpack.c.l.b16 %v26
    %v57 = vunpack.c.h.b16 %v26
    %v58 = vunpack.c.l.b16 %v27
    %v59 = vunpack.c.h.b16 %v27
    %v60 = vunpack.c.l.b16 %v28
    %v61 = vunpack.c.h.b16 %v28
    %v62 = vunpack.c.l.b16 %v29
    %v63 = vunpack.c.h.b16 %v29
    %v64 = vunpack.c.l.b16 %v30
    %v65 = vunpack.c.h.b16 %v30
    %v66 = vunpack.c.l.b16 %v31
    %v67 = vunpack.c.h.b16 %v31
    %v68 = vpack.c.b16 %v54, %v52
    %v69 = vpack.c.b16 %v55, %v53
    %v70 = vpack.c.b16 %v58, %v56
    %v71 = vpack.c.b16 %v59, %v57
    %v72 = vpack.c.b16 %v62, %v60
    %v73 = vpack.c.b16 %v63, %v61
    %v74 = vpack.c.b16 %v66, %v64
    %v75 = vpack.c.b16 %v67, %v65
    %vm84 = vcmask 523264
    %v86 = vsel %vm84, %v23, 0
    %88 = vmatprep.subr.bf16.mxu0 0
    %89 = vmatpush1.bf16.msra.mxu0 0
    %90 = vmatprep.subr.bf16.mxu0 0
    %91 = vmatpush1.bf16.msra.mxu0 0
    %92 = vmatprep.subr.bf16.mxu0 0
    %93 = vmatpush1.bf16.msra.mxu0 0
    %94 = vmatprep.subr.bf16.mxu0 0
    %95 = vmatpush1.bf16.msra.mxu0 0
    %96 = vmatprep.subr.bf16.mxu0 %v75
    %97 = vmatpush1.bf16.msra.mxu0 %v74
    %98 = vmatprep.subr.bf16.mxu0 %v73
    %99 = vmatpush1.bf16.msra.mxu0 %v72
    %100 = vmatprep.subr.bf16.mxu0 %v71
    %101 = vmatpush1.bf16.msra.mxu0 %v70
    %102 = vmatprep.subr.bf16.mxu0 %v69
    %103 = vmatpush1.bf16.msra.mxu0 %v68
    %104 = vmatprep.subr.bf16.mxu0 0
    %105 = vmatpush2.bf16.msra.mxu0 0
    %106 = vmatprep.subr.bf16.mxu0 0
    %107 = vmatpush2.bf16.msra.mxu0 0
    %108 = vmatprep.subr.bf16.mxu0 0
    %109 = vmatpush2.bf16.msra.mxu0 0
    %110 = vmatprep.subr.bf16.mxu0 0
    %111 = vmatpush2.bf16.msra.mxu0 0
    %112 = vmatprep.subr.bf16.mxu0 0
    %113 = vmatpush2.bf16.msra.mxu0 0
    %114 = vmatprep.subr.bf16.mxu0 0
    %115 = vmatpush2.bf16.msra.mxu0 0
    %116 = vmatprep.subr.bf16.mxu0 0
    %117 = vmatpush2.bf16.msra.mxu0 0
    %118 = vmatprep.subr.bf16.mxu0 0
    %119 = vmatpush2.bf16.msra.mxu0 0
    %120 = vmatprep.mubr.bf16.mxu0 0
    %121 = vmatmul.mubr.bf16.gmra.mxu0 %v86
    %v122 = vpop.f32.mrf.mxu0
    %v123 = vadd.f32 %v37, %v122
    %v124 = vpop.f32.mrf.mxu0
    %v125 = vadd.f32 %v41, %v124
    %v126 = vpop.f32.mrf.mxu0
    %v127 = vpop.f32.mrf.mxu0
    %128 = vdwg.mxu0
    %vm129 = vcmp.ge.f32.partialorder %v123, 0.0
    %vm130 = vcmp.ge.f32.partialorder %v125, 0.0
    %v131 = vmul.f32 %v123, 0.01
    %v132 = vmul.f32 %v125, 0.01
    %v133 = vsel %vm129, %v123, %v131
    %v134 = vsel %vm130, %v125, %v132
    %v135 = vpack.c.bf16 %v133, %v133
    %v136 = vpack.c.bf16 %v134, %v134
    %v137 = vld [vmem:[%s3] sm:$0xff]
    %v138 = vld [vmem:[%s3 + $0x8] sm:$0xff]
    %v139 = vld [vmem:[%s3 + $0x10] sm:$0xff]
    %v140 = vld [vmem:[%s3 + $0x18] sm:$0xf]
    %v141 = vld [vmem:[%s3 + $0x1c] sm:$0xff]
    %v142 = vld [vmem:[%s3 + $0x24] sm:$0xff]
    %v143 = vld [vmem:[%s3 + $0x2c] sm:$0xff]
    %v144 = vld [vmem:[%s3 + $0x34] sm:$0xf]
    %v145 = vld [vmem:[%s3 + $0x38] sm:$0xff]
    %v146 = vld [vmem:[%s3 + $0x40] sm:$0xff]
    %v147 = vld [vmem:[%s3 + $0x48] sm:$0xff]
    %v148 = vld [vmem:[%s3 + $0x50] sm:$0xf]
    %v149 = vld [vmem:[%s3 + $0x54] sm:$0xff]
    %v150 = vld [vmem:[%s3 + $0x5c] sm:$0xff]
    %v151 = vld [vmem:[%s3 + $0x64] sm:$0xff]
    %v152 = vld [vmem:[%s3 + $0x6c] sm:$0xf]
    %v153 = vld [vmem:[%s3 + $0x70] sm:$0xff]
    %v154 = vld [vmem:[%s3 + $0x78] sm:$0xff]
    %v155 = vld [vmem:[%s3 + $0x80] sm:$0xff]
    %v156 = vld [vmem:[%s3 + $0x88] sm:$0xf]
    %v157 = vld [vmem:[%s3 + $0x8c] sm:$0xff]
    %v158 = vld [vmem:[%s3 + $0x94] sm:$0xff]
    %v159 = vld [vmem:[%s3 + $0x9c] sm:$0xff]
    %v160 = vld [vmem:[%s3 + $0xa4] sm:$0xf]
    %v161 = vld [vmem:[%s3 + $0xa8] sm:$0xff]
    %v162 = vld [vmem:[%s3 + $0xb0] sm:$0xff]
    %v163 = vld [vmem:[%s3 + $0xb8] sm:$0xff]
    %v164 = vld [vmem:[%s3 + $0xc0] sm:$0xf]
    %v165 = vld [vmem:[%s3 + $0xc4] sm:$0xff]
    %v166 = vld [vmem:[%s3 + $0xcc] sm:$0xff]
    %v167 = vld [vmem:[%s3 + $0xd4] sm:$0xff]
    %v168 = vld [vmem:[%s3 + $0xdc] sm:$0xf]
    %v169 = vld [vmem:[%s3 + $0xe0] sm:$0xff]
    %v170 = vld [vmem:[%s3 + $0xe8] sm:$0xff]
    %v171 = vld [vmem:[%s3 + $0xf0] sm:$0xff]
    %v172 = vld [vmem:[%s3 + $0xf8] sm:$0xf]
    %v173 = vld [vmem:[%s3 + $0xfc] sm:$0xff]
    %v174 = vld [vmem:[%s3 + $0x104] sm:$0xff]
    %v175 = vld [vmem:[%s3 + $0x10c] sm:$0xff]
    %v176 = vld [vmem:[%s3 + $0x114] sm:$0xf]
    %v177 = vld [vmem:[%s3 + $0x118] sm:$0xff]
    %v178 = vld [vmem:[%s3 + $0x120] sm:$0xff]
    %v179 = vld [vmem:[%s3 + $0x128] sm:$0xff]
    %v180 = vld [vmem:[%s3 + $0x130] sm:$0xf]
    %v181 = vld [vmem:[%s3 + $0x134] sm:$0xff]
    %v182 = vld [vmem:[%s3 + $0x13c] sm:$0xff]
    %v183 = vld [vmem:[%s3 + $0x144] sm:$0xff]
    %v184 = vld [vmem:[%s3 + $0x14c] sm:$0xf]
    %v185 = vld [vmem:[%s3 + $0x150] sm:$0xff]
    %v186 = vld [vmem:[%s3 + $0x158] sm:$0xff]
    %v187 = vld [vmem:[%s3 + $0x160] sm:$0xff]
    %v188 = vld [vmem:[%s3 + $0x168] sm:$0xf]
    %v189 = vld [vmem:[%s3 + $0x16c] sm:$0xff]
    %v190 = vld [vmem:[%s3 + $0x174] sm:$0xff]
    %v191 = vld [vmem:[%s3 + $0x17c] sm:$0xff]
    %v192 = vld [vmem:[%s3 + $0x184] sm:$0xf]
    %v193 = vld [vmem:[%s3 + $0x188] sm:$0xff]
    %v194 = vld [vmem:[%s3 + $0x190] sm:$0xff]
    %v195 = vld [vmem:[%s3 + $0x198] sm:$0xff]
    %v196 = vld [vmem:[%s3 + $0x1a0] sm:$0xf]
    %v197 = vld [vmem:[%s3 + $0x1a4] sm:$0xff]
    %v198 = vld [vmem:[%s3 + $0x1ac] sm:$0xff]
    %v199 = vld [vmem:[%s3 + $0x1b4] sm:$0xff]
    %v200 = vld [vmem:[%s3 + $0x1bc] sm:$0xf]
    %v201 = vld [vmem:[%s3 + $0x1c0] sm:$0xff]
    %v202 = vld [vmem:[%s3 + $0x1c8] sm:$0xff]
    %v203 = vld [vmem:[%s3 + $0x1d0] sm:$0xff]
    %v204 = vld [vmem:[%s3 + $0x1d8] sm:$0xf]
    %v205 = vld [vmem:[%s3 + $0x1dc] sm:$0xff]
    %v206 = vld [vmem:[%s3 + $0x1e4] sm:$0xff]
    %v207 = vld [vmem:[%s3 + $0x1ec] sm:$0xff]
    %v208 = vld [vmem:[%s3 + $0x1f4] sm:$0xf]
    %v209 = vld [vmem:[%s3 + $0x1f8] sm:$0xff]
    %v210 = vld [vmem:[%s3 + $0x200] sm:$0xff]
    %v211 = vld [vmem:[%s3 + $0x208] sm:$0xff]
    %v212 = vld [vmem:[%s3 + $0x210] sm:$0xf]
    %v213 = vld [vmem:[%s3 + $0x214] sm:$0xff]
    %v214 = vld [vmem:[%s3 + $0x21c] sm:$0xff]
    %v215 = vld [vmem:[%s3 + $0x224] sm:$0xff]
    %v216 = vld [vmem:[%s3 + $0x22c] sm:$0xf]
    %v217 = vld [vmem:[%s3 + $0x230] sm:$0xff]
    %v218 = vld [vmem:[%s3 + $0x238] sm:$0xff]
    %v219 = vld [vmem:[%s3 + $0x240] sm:$0xff]
    %v220 = vld [vmem:[%s3 + $0x248] sm:$0xf]
    %v221 = vld [vmem:[%s3 + $0x24c] sm:$0xff]
    %v222 = vld [vmem:[%s3 + $0x254] sm:$0xff]
    %v223 = vld [vmem:[%s3 + $0x25c] sm:$0xff]
    %v224 = vld [vmem:[%s3 + $0x264] sm:$0xf]
    %v225 = vld [vmem:[%s3 + $0x268] sm:$0xff]
    %v226 = vld [vmem:[%s3 + $0x270] sm:$0xff]
    %v227 = vld [vmem:[%s3 + $0x278] sm:$0xff]
    %v228 = vld [vmem:[%s3 + $0x280] sm:$0xf]
    %v229 = vld [vmem:[%s3 + $0x284] sm:$0xff]
    %v230 = vld [vmem:[%s3 + $0x28c] sm:$0xff]
    %v231 = vld [vmem:[%s3 + $0x294] sm:$0xff]
    %v232 = vld [vmem:[%s3 + $0x29c] sm:$0xf]
    %v233 = vld [vmem:[%s3 + $0x2a0] sm:$0xff]
    %v234 = vld [vmem:[%s3 + $0x2a8] sm:$0xff]
    %v235 = vld [vmem:[%s3 + $0x2b0] sm:$0xff]
    %v236 = vld [vmem:[%s3 + $0x2b8] sm:$0xf]
    %v237 = vld [vmem:[%s3 + $0x2bc] sm:$0xff]
    %v238 = vld [vmem:[%s3 + $0x2c4] sm:$0xff]
    %v239 = vld [vmem:[%s3 + $0x2cc] sm:$0xff]
    %v240 = vld [vmem:[%s3 + $0x2d4] sm:$0xf]
    %v241 = vld [vmem:[%s3 + $0x2d8] sm:$0xff]
    %v242 = vld [vmem:[%s3 + $0x2e0] sm:$0xff]
    %v243 = vld [vmem:[%s3 + $0x2e8] sm:$0xff]
    %v244 = vld [vmem:[%s3 + $0x2f0] sm:$0xf]
    %v245 = vld [vmem:[%s3 + $0x2f4] sm:$0xff]
    %v246 = vld [vmem:[%s3 + $0x2fc] sm:$0xff]
    %v247 = vld [vmem:[%s3 + $0x304] sm:$0xff]
    %v248 = vld [vmem:[%s3 + $0x30c] sm:$0xf]
    %v249 = vld [vmem:[%s3 + $0x310] sm:$0xff]
    %v250 = vld [vmem:[%s3 + $0x318] sm:$0xff]
    %v251 = vld [vmem:[%s3 + $0x320] sm:$0xff]
    %v252 = vld [vmem:[%s3 + $0x328] sm:$0xf]
    %v253 = vld [vmem:[%s3 + $0x32c] sm:$0xff]
    %v254 = vld [vmem:[%s3 + $0x334] sm:$0xff]
    %v255 = vld [vmem:[%s3 + $0x33c] sm:$0xff]
    %v256 = vld [vmem:[%s3 + $0x344] sm:$0xf]
    %v257 = vld [vmem:[%s3 + $0x348] sm:$0xff]
    %v258 = vld [vmem:[%s3 + $0x350] sm:$0xff]
    %v259 = vld [vmem:[%s3 + $0x358] sm:$0xff]
    %v260 = vld [vmem:[%s3 + $0x360] sm:$0xf]
    %v261 = vld [vmem:[%s3 + $0x364] sm:$0xff]
    %v262 = vld [vmem:[%s3 + $0x36c] sm:$0xff]
    %v263 = vld [vmem:[%s3 + $0x374] sm:$0xff]
    %v264 = vld [vmem:[%s3 + $0x37c] sm:$0xf]
    %v265 = vld [vmem:[%s4] sm:$0x7f]
    %v267 = vlaneseq
    %v268 = vshrl.u32 %v267, 7
    %v269 = vsub.s32 0, %v268
    %v270 = vrot.slane %v265, %v269
    %v271 = vlaneseq
    %v272 = vshrl.u32 %v271, 7
    %v273 = vsub.s32 1, %v272
    %v274 = vrot.slane %v265, %v273
    %v275 = vlaneseq
    %v276 = vshrl.u32 %v275, 7
    %v277 = vsub.s32 2, %v276
    %v278 = vrot.slane %v265, %v277
    %v279 = vlaneseq
    %v280 = vshrl.u32 %v279, 7
    %v281 = vsub.s32 3, %v280
    %v282 = vrot.slane %v265, %v281
    %v283 = vlaneseq
    %v284 = vshrl.u32 %v283, 7
    %v285 = vsub.s32 4, %v284
    %v286 = vrot.slane %v265, %v285
    %v287 = vlaneseq
    %v288 = vshrl.u32 %v287, 7
    %v289 = vsub.s32 5, %v288
    %v290 = vrot.slane %v265, %v289
    %v291 = vlaneseq
    %v292 = vshrl.u32 %v291, 7
    %v293 = vsub.s32 6, %v292
    %v294 = vrot.slane %v265, %v293
    %v430 = vunpack.c.l.b16 %v137
    %v431 = vunpack.c.h.b16 %v137
    %v432 = vunpack.c.l.b16 %v138
    %v433 = vunpack.c.h.b16 %v138
    %v434 = vunpack.c.l.b16 %v139
    %v435 = vunpack.c.h.b16 %v139
    %v436 = vunpack.c.l.b16 %v140
    %v437 = vunpack.c.l.b16 %v141
    %v438 = vunpack.c.h.b16 %v141
    %v439 = vunpack.c.l.b16 %v142
    %v440 = vunpack.c.h.b16 %v142
    %v441 = vunpack.c.l.b16 %v143
    %v442 = vunpack.c.h.b16 %v143
    %v443 = vunpack.c.l.b16 %v144
    %v444 = vunpack.c.l.b16 %v145
    %v445 = vunpack.c.h.b16 %v145
    %v446 = vunpack.c.l.b16 %v146
    %v447 = vunpack.c.h.b16 %v146
    %v448 = vunpack.c.l.b16 %v147
    %v449 = vunpack.c.h.b16 %v147
    %v450 = vunpack.c.l.b16 %v148
    %v451 = vunpack.c.l.b16 %v149
    %v452 = vunpack.c.h.b16 %v149
    %v453 = vunpack.c.l.b16 %v150
    %v454 = vunpack.c.h.b16 %v150
    %v455 = vunpack.c.l.b16 %v151
    %v456 = vunpack.c.h.b16 %v151
    %v457 = vunpack.c.l.b16 %v152
    %v458 = vunpack.c.l.b16 %v153
    %v459 = vunpack.c.h.b16 %v153
    %v460 = vunpack.c.l.b16 %v154
    %v461 = vunpack.c.h.b16 %v154
    %v462 = vunpack.c.l.b16 %v155
    %v463 = vunpack.c.h.b16 %v155
    %v464 = vunpack.c.l.b16 %v156
    %v465 = vunpack.c.l.b16 %v157
    %v466 = vunpack.c.h.b16 %v157
    %v467 = vunpack.c.l.b16 %v158
    %v468 = vunpack.c.h.b16 %v158
    %v469 = vunpack.c.l.b16 %v159
    %v470 = vunpack.c.h.b16 %v159
    %v471 = vunpack.c.l.b16 %v160
    %v472 = vunpack.c.l.b16 %v161
    %v473 = vunpack.c.h.b16 %v161
    %v474 = vunpack.c.l.b16 %v162
    %v475 = vunpack.c.h.b16 %v162
    %v476 = vunpack.c.l.b16 %v163
    %v477 = vunpack.c.h.b16 %v163
    %v478 = vunpack.c.l.b16 %v164
    %v479 = vunpack.c.l.b16 %v165
    %v480 = vunpack.c.h.b16 %v165
    %v481 = vunpack.c.l.b16 %v166
    %v482 = vunpack.c.h.b16 %v166
    %v483 = vunpack.c.l.b16 %v167
    %v484 = vunpack.c.h.b16 %v167
    %v485 = vunpack.c.l.b16 %v168
    %v486 = vunpack.c.l.b16 %v169
    %v487 = vunpack.c.h.b16 %v169
    %v488 = vunpack.c.l.b16 %v170
    %v489 = vunpack.c.h.b16 %v170
    %v490 = vunpack.c.l.b16 %v171
    %v491 = vunpack.c.h.b16 %v171
    %v492 = vunpack.c.l.b16 %v172
    %v493 = vunpack.c.l.b16 %v173
    %v494 = vunpack.c.h.b16 %v173
    %v495 = vunpack.c.l.b16 %v174
    %v496 = vunpack.c.h.b16 %v174
    %v497 = vunpack.c.l.b16 %v175
    %v498 = vunpack.c.h.b16 %v175
    %v499 = vunpack.c.l.b16 %v176
    %v500 = vunpack.c.l.b16 %v177
    %v501 = vunpack.c.h.b16 %v177
    %v502 = vunpack.c.l.b16 %v178
    %v503 = vunpack.c.h.b16 %v178
    %v504 = vunpack.c.l.b16 %v179
    %v505 = vunpack.c.h.b16 %v179
    %v506 = vunpack.c.l.b16 %v180
    %v507 = vunpack.c.l.b16 %v181
    %v508 = vunpack.c.h.b16 %v181
    %v509 = vunpack.c.l.b16 %v182
    %v510 = vunpack.c.h.b16 %v182
    %v511 = vunpack.c.l.b16 %v183
    %v512 = vunpack.c.h.b16 %v183
    %v513 = vunpack.c.l.b16 %v184
    %v514 = vunpack.c.l.b16 %v185
    %v515 = vunpack.c.h.b16 %v185
    %v516 = vunpack.c.l.b16 %v186
    %v517 = vunpack.c.h.b16 %v186
    %v518 = vunpack.c.l.b16 %v187
    %v519 = vunpack.c.h.b16 %v187
    %v520 = vunpack.c.l.b16 %v188
    %v521 = vunpack.c.l.b16 %v189
    %v522 = vunpack.c.h.b16 %v189
    %v523 = vunpack.c.l.b16 %v190
    %v524 = vunpack.c.h.b16 %v190
    %v525 = vunpack.c.l.b16 %v191
    %v526 = vunpack.c.h.b16 %v191
    %v527 = vunpack.c.l.b16 %v192
    %v528 = vunpack.c.l.b16 %v193
    %v529 = vunpack.c.h.b16 %v193
    %v530 = vunpack.c.l.b16 %v194
    %v531 = vunpack.c.h.b16 %v194
    %v532 = vunpack.c.l.b16 %v195
    %v533 = vunpack.c.h.b16 %v195
    %v534 = vunpack.c.l.b16 %v196
    %v535 = vunpack.c.l.b16 %v197
    %v536 = vunpack.c.h.b16 %v197
    %v537 = vunpack.c.l.b16 %v198
    %v538 = vunpack.c.h.b16 %v198
    %v539 = vunpack.c.l.b16 %v199
    %v540 = vunpack.c.h.b16 %v199
    %v541 = vunpack.c.l.b16 %v200
    %v542 = vunpack.c.l.b16 %v201
    %v543 = vunpack.c.h.b16 %v201
    %v544 = vunpack.c.l.b16 %v202
    %v545 = vunpack.c.h.b16 %v202
    %v546 = vunpack.c.l.b16 %v203
    %v547 = vunpack.c.h.b16 %v203
    %v548 = vunpack.c.l.b16 %v204
    %v549 = vunpack.c.l.b16 %v205
    %v550 = vunpack.c.h.b16 %v205
    %v551 = vunpack.c.l.b16 %v206
    %v552 = vunpack.c.h.b16 %v206
    %v553 = vunpack.c.l.b16 %v207
    %v554 = vunpack.c.h.b16 %v207
    %v555 = vunpack.c.l.b16 %v208
    %v556 = vunpack.c.l.b16 %v209
    %v557 = vunpack.c.h.b16 %v209
    %v558 = vunpack.c.l.b16 %v210
    %v559 = vunpack.c.h.b16 %v210
    %v560 = vunpack.c.l.b16 %v211
    %v561 = vunpack.c.h.b16 %v211
    %v562 = vunpack.c.l.b16 %v212
    %v563 = vunpack.c.l.b16 %v213
    %v564 = vunpack.c.h.b16 %v213
    %v565 = vunpack.c.l.b16 %v214
    %v566 = vunpack.c.h.b16 %v214
    %v567 = vunpack.c.l.b16 %v215
    %v568 = vunpack.c.h.b16 %v215
    %v569 = vunpack.c.l.b16 %v216
    %v570 = vunpack.c.l.b16 %v217
    %v571 = vunpack.c.h.b16 %v217
    %v572 = vunpack.c.l.b16 %v218
    %v573 = vunpack.c.h.b16 %v218
    %v574 = vunpack.c.l.b16 %v219
    %v575 = vunpack.c.h.b16 %v219
    %v576 = vunpack.c.l.b16 %v220
    %v577 = vunpack.c.l.b16 %v221
    %v578 = vunpack.c.h.b16 %v221
    %v579 = vunpack.c.l.b16 %v222
    %v580 = vunpack.c.h.b16 %v222
    %v581 = vunpack.c.l.b16 %v223
    %v582 = vunpack.c.h.b16 %v223
    %v583 = vunpack.c.l.b16 %v224
    %v584 = vunpack.c.l.b16 %v225
    %v585 = vunpack.c.h.b16 %v225
    %v586 = vunpack.c.l.b16 %v226
    %v587 = vunpack.c.h.b16 %v226
    %v588 = vunpack.c.l.b16 %v227
    %v589 = vunpack.c.h.b16 %v227
    %v590 = vunpack.c.l.b16 %v228
    %v591 = vunpack.c.l.b16 %v229
    %v592 = vunpack.c.h.b16 %v229
    %v593 = vunpack.c.l.b16 %v230
    %v594 = vunpack.c.h.b16 %v230
    %v595 = vunpack.c.l.b16 %v231
    %v596 = vunpack.c.h.b16 %v231
    %v597 = vunpack.c.l.b16 %v232
    %v598 = vunpack.c.l.b16 %v233
    %v599 = vunpack.c.h.b16 %v233
    %v600 = vunpack.c.l.b16 %v234
    %v601 = vunpack.c.h.b16 %v234
    %v602 = vunpack.c.l.b16 %v235
    %v603 = vunpack.c.h.b16 %v235
    %v604 = vunpack.c.l.b16 %v236
    %v605 = vunpack.c.l.b16 %v237
    %v606 = vunpack.c.h.b16 %v237
    %v607 = vunpack.c.l.b16 %v238
    %v608 = vunpack.c.h.b16 %v238
    %v609 = vunpack.c.l.b16 %v239
    %v610 = vunpack.c.h.b16 %v239
    %v611 = vunpack.c.l.b16 %v240
    %v612 = vunpack.c.l.b16 %v241
    %v613 = vunpack.c.h.b16 %v241
    %v614 = vunpack.c.l.b16 %v242
    %v615 = vunpack.c.h.b16 %v242
    %v616 = vunpack.c.l.b16 %v243
    %v617 = vunpack.c.h.b16 %v243
    %v618 = vunpack.c.l.b16 %v244
    %v619 = vunpack.c.l.b16 %v245
    %v620 = vunpack.c.h.b16 %v245
    %v621 = vunpack.c.l.b16 %v246
    %v622 = vunpack.c.h.b16 %v246
    %v623 = vunpack.c.l.b16 %v247
    %v624 = vunpack.c.h.b16 %v247
    %v625 = vunpack.c.l.b16 %v248
    %v626 = vunpack.c.l.b16 %v249
    %v627 = vunpack.c.h.b16 %v249
    %v628 = vunpack.c.l.b16 %v250
    %v629 = vunpack.c.h.b16 %v250
    %v630 = vunpack.c.l.b16 %v251
    %v631 = vunpack.c.h.b16 %v251
    %v632 = vunpack.c.l.b16 %v252
    %v633 = vunpack.c.l.b16 %v253
    %v634 = vunpack.c.h.b16 %v253
    %v635 = vunpack.c.l.b16 %v254
    %v636 = vunpack.c.h.b16 %v254
    %v637 = vunpack.c.l.b16 %v255
    %v638 = vunpack.c.h.b16 %v255
    %v639 = vunpack.c.l.b16 %v256
    %v640 = vunpack.c.l.b16 %v257
    %v641 = vunpack.c.h.b16 %v257
    %v642 = vunpack.c.l.b16 %v258
    %v643 = vunpack.c.h.b16 %v258
    %v644 = vunpack.c.l.b16 %v259
    %v645 = vunpack.c.h.b16 %v259
    %v646 = vunpack.c.l.b16 %v260
    %v647 = vunpack.c.l.b16 %v261
    %v648 = vunpack.c.h.b16 %v261
    %v649 = vunpack.c.l.b16 %v262
    %v650 = vunpack.c.h.b16 %v262
    %v651 = vunpack.c.l.b16 %v263
    %v652 = vunpack.c.h.b16 %v263
    %v653 = vunpack.c.l.b16 %v264
    %v654 = vpack.c.b16 %v437, %v430
    %v655 = vpack.c.b16 %v438, %v431
    %v656 = vpack.c.b16 %v439, %v432
    %v657 = vpack.c.b16 %v440, %v433
    %v658 = vpack.c.b16 %v441, %v434
    %v659 = vpack.c.b16 %v442, %v435
    %v660 = vpack.c.b16 %v443, %v436
    %v661 = vpack.c.b16 %v451, %v444
    %v662 = vpack.c.b16 %v452, %v445
    %v663 = vpack.c.b16 %v453, %v446
    %v664 = vpack.c.b16 %v454, %v447
    %v665 = vpack.c.b16 %v455, %v448
    %v666 = vpack.c.b16 %v456, %v449
    %v667 = vpack.c.b16 %v457, %v450
    %v668 = vpack.c.b16 %v465, %v458
    %v669 = vpack.c.b16 %v466, %v459
    %v670 = vpack.c.b16 %v467, %v460
    %v671 = vpack.c.b16 %v468, %v461
    %v672 = vpack.c.b16 %v469, %v462
    %v673 = vpack.c.b16 %v470, %v463
    %v674 = vpack.c.b16 %v471, %v464
    %v675 = vpack.c.b16 %v479, %v472
    %v676 = vpack.c.b16 %v480, %v473
    %v677 = vpack.c.b16 %v481, %v474
    %v678 = vpack.c.b16 %v482, %v475
    %v679 = vpack.c.b16 %v483, %v476
    %v680 = vpack.c.b16 %v484, %v477
    %v681 = vpack.c.b16 %v485, %v478
    %v682 = vpack.c.b16 %v493, %v486
    %v683 = vpack.c.b16 %v494, %v487
    %v684 = vpack.c.b16 %v495, %v488
    %v685 = vpack.c.b16 %v496, %v489
    %v686 = vpack.c.b16 %v497, %v490
    %v687 = vpack.c.b16 %v498, %v491
    %v688 = vpack.c.b16 %v499, %v492
    %v689 = vpack.c.b16 %v507, %v500
    %v690 = vpack.c.b16 %v508, %v501
    %v691 = vpack.c.b16 %v509, %v502
    %v692 = vpack.c.b16 %v510, %v503
    %v693 = vpack.c.b16 %v511, %v504
    %v694 = vpack.c.b16 %v512, %v505
    %v695 = vpack.c.b16 %v513, %v506
    %v696 = vpack.c.b16 %v521, %v514
    %v697 = vpack.c.b16 %v522, %v515
    %v698 = vpack.c.b16 %v523, %v516
    %v699 = vpack.c.b16 %v524, %v517
    %v700 = vpack.c.b16 %v525, %v518
    %v701 = vpack.c.b16 %v526, %v519
    %v702 = vpack.c.b16 %v527, %v520
    %v703 = vpack.c.b16 %v535, %v528
    %v704 = vpack.c.b16 %v536, %v529
    %v705 = vpack.c.b16 %v537, %v530
    %v706 = vpack.c.b16 %v538, %v531
    %v707 = vpack.c.b16 %v539, %v532
    %v708 = vpack.c.b16 %v540, %v533
    %v709 = vpack.c.b16 %v541, %v534
    %v710 = vpack.c.b16 %v549, %v542
    %v711 = vpack.c.b16 %v550, %v543
    %v712 = vpack.c.b16 %v551, %v544
    %v713 = vpack.c.b16 %v552, %v545
    %v714 = vpack.c.b16 %v553, %v546
    %v715 = vpack.c.b16 %v554, %v547
    %v716 = vpack.c.b16 %v555, %v548
    %v717 = vpack.c.b16 %v563, %v556
    %v718 = vpack.c.b16 %v564, %v557
    %v719 = vpack.c.b16 %v565, %v558
    %v720 = vpack.c.b16 %v566, %v559
    %v721 = vpack.c.b16 %v567, %v560
    %v722 = vpack.c.b16 %v568, %v561
    %v723 = vpack.c.b16 %v569, %v562
    %v724 = vpack.c.b16 %v577, %v570
    %v725 = vpack.c.b16 %v578, %v571
    %v726 = vpack.c.b16 %v579, %v572
    %v727 = vpack.c.b16 %v580, %v573
    %v728 = vpack.c.b16 %v581, %v574
    %v729 = vpack.c.b16 %v582, %v575
    %v730 = vpack.c.b16 %v583, %v576
    %v731 = vpack.c.b16 %v591, %v584
    %v732 = vpack.c.b16 %v592, %v585
    %v733 = vpack.c.b16 %v593, %v586
    %v734 = vpack.c.b16 %v594, %v587
    %v735 = vpack.c.b16 %v595, %v588
    %v736 = vpack.c.b16 %v596, %v589
    %v737 = vpack.c.b16 %v597, %v590
    %v738 = vpack.c.b16 %v605, %v598
    %v739 = vpack.c.b16 %v606, %v599
    %v740 = vpack.c.b16 %v607, %v600
    %v741 = vpack.c.b16 %v608, %v601
    %v742 = vpack.c.b16 %v609, %v602
    %v743 = vpack.c.b16 %v610, %v603
    %v744 = vpack.c.b16 %v611, %v604
    %v745 = vpack.c.b16 %v619, %v612
    %v746 = vpack.c.b16 %v620, %v613
    %v747 = vpack.c.b16 %v621, %v614
    %v748 = vpack.c.b16 %v622, %v615
    %v749 = vpack.c.b16 %v623, %v616
    %v750 = vpack.c.b16 %v624, %v617
    %v751 = vpack.c.b16 %v625, %v618
    %v752 = vpack.c.b16 %v633, %v626
    %v753 = vpack.c.b16 %v634, %v627
    %v754 = vpack.c.b16 %v635, %v628
    %v755 = vpack.c.b16 %v636, %v629
    %v756 = vpack.c.b16 %v637, %v630
    %v757 = vpack.c.b16 %v638, %v631
    %v758 = vpack.c.b16 %v639, %v632
    %v759 = vpack.c.b16 %v647, %v640
    %v760 = vpack.c.b16 %v648, %v641
    %v761 = vpack.c.b16 %v649, %v642
    %v762 = vpack.c.b16 %v650, %v643
    %v763 = vpack.c.b16 %v651, %v644
    %v764 = vpack.c.b16 %v652, %v645
    %v765 = vpack.c.b16 %v653, %v646
    %878 = vmatprep.subr.bf16.mxu0 %v704
    %879 = vmatpush1.bf16.msra.mxu0 %v703
    %880 = vmatprep.subr.bf16.mxu0 %v697
    %881 = vmatpush1.bf16.msra.mxu0 %v696
    %882 = vmatprep.subr.bf16.mxu0 %v690
    %883 = vmatpush1.bf16.msra.mxu0 %v689
    %884 = vmatprep.subr.bf16.mxu0 %v683
    %885 = vmatpush1.bf16.msra.mxu0 %v682
    %886 = vmatprep.subr.bf16.mxu0 %v676
    %887 = vmatpush1.bf16.msra.mxu0 %v675
    %888 = vmatprep.subr.bf16.mxu0 %v669
    %889 = vmatpush1.bf16.msra.mxu0 %v668
    %890 = vmatprep.subr.bf16.mxu0 %v662
    %891 = vmatpush1.bf16.msra.mxu0 %v661
    %892 = vmatprep.subr.bf16.mxu0 %v655
    %893 = vmatpush1.bf16.msra.mxu0 %v654
    %894 = vmatprep.subr.bf16.mxu0 %v760
    %895 = vmatpush2.bf16.msra.mxu0 %v759
    %896 = vmatprep.subr.bf16.mxu0 %v753
    %897 = vmatpush2.bf16.msra.mxu0 %v752
    %898 = vmatprep.subr.bf16.mxu0 %v746
    %899 = vmatpush2.bf16.msra.mxu0 %v745
    %900 = vmatprep.subr.bf16.mxu0 %v739
    %901 = vmatpush2.bf16.msra.mxu0 %v738
    %902 = vmatprep.subr.bf16.mxu0 %v732
    %903 = vmatpush2.bf16.msra.mxu0 %v731
    %904 = vmatprep.subr.bf16.mxu0 %v725
    %905 = vmatpush2.bf16.msra.mxu0 %v724
    %906 = vmatprep.subr.bf16.mxu0 %v718
    %907 = vmatpush2.bf16.msra.mxu0 %v717
    %908 = vmatprep.subr.bf16.mxu0 %v711
    %909 = vmatpush2.bf16.msra.mxu0 %v710
    %910 = vmatprep.mubr.bf16.mxu0 %v136
    %911 = vmatmul.mubr.bf16.gmra.mxu0 %v135
    %v912 = vpop.f32.mrf.mxu0
    %v913 = vadd.f32 %v270, %v912
    %v914 = vpop.f32.mrf.mxu0
    %v915 = vadd.f32 %v274, %v914
    %v916 = vpop.f32.mrf.mxu0
    %v917 = vpop.f32.mrf.mxu0
    %918 = vdwg.mxu0
    %919 = vmatprep.subr.bf16.mxu0 %v706
    %920 = vmatpush1.bf16.msra.mxu0 %v705
    %921 = vmatprep.subr.bf16.mxu0 %v699
    %922 = vmatpush1.bf16.msra.mxu0 %v698
    %923 = vmatprep.subr.bf16.mxu0 %v692
    %924 = vmatpush1.bf16.msra.mxu0 %v691
    %925 = vmatprep.subr.bf16.mxu0 %v685
    %926 = vmatpush1.bf16.msra.mxu0 %v684
    %927 = vmatprep.subr.bf16.mxu0 %v678
    %928 = vmatpush1.bf16.msra.mxu0 %v677
    %929 = vmatprep.subr.bf16.mxu0 %v671
    %930 = vmatpush1.bf16.msra.mxu0 %v670
    %931 = vmatprep.subr.bf16.mxu0 %v664
    %932 = vmatpush1.bf16.msra.mxu0 %v663
    %933 = vmatprep.subr.bf16.mxu0 %v657
    %934 = vmatpush1.bf16.msra.mxu0 %v656
    %935 = vmatprep.subr.bf16.mxu0 %v762
    %936 = vmatpush2.bf16.msra.mxu0 %v761
    %937 = vmatprep.subr.bf16.mxu0 %v755
    %938 = vmatpush2.bf16.msra.mxu0 %v754
    %939 = vmatprep.subr.bf16.mxu0 %v748
    %940 = vmatpush2.bf16.msra.mxu0 %v747
    %941 = vmatprep.subr.bf16.mxu0 %v741
    %942 = vmatpush2.bf16.msra.mxu0 %v740
    %943 = vmatprep.subr.bf16.mxu0 %v734
    %944 = vmatpush2.bf16.msra.mxu0 %v733
    %945 = vmatprep.subr.bf16.mxu0 %v727
    %946 = vmatpush2.bf16.msra.mxu0 %v726
    %947 = vmatprep.subr.bf16.mxu0 %v720
    %948 = vmatpush2.bf16.msra.mxu0 %v719
    %949 = vmatprep.subr.bf16.mxu0 %v713
    %950 = vmatpush2.bf16.msra.mxu0 %v712
    %951 = vmatprep.mubr.bf16.mxu0 %v136
    %952 = vmatmul.mubr.bf16.gmra.mxu0 %v135
    %v953 = vpop.f32.mrf.mxu0
    %v954 = vadd.f32 %v278, %v953
    %v955 = vpop.f32.mrf.mxu0
    %v956 = vadd.f32 %v282, %v955
    %v957 = vpop.f32.mrf.mxu0
    %v958 = vpop.f32.mrf.mxu0
    %959 = vdwg.mxu0
    %960 = vmatprep.subr.bf16.mxu0 %v708
    %961 = vmatpush1.bf16.msra.mxu0 %v707
    %962 = vmatprep.subr.bf16.mxu0 %v701
    %963 = vmatpush1.bf16.msra.mxu0 %v700
    %964 = vmatprep.subr.bf16.mxu0 %v694
    %965 = vmatpush1.bf16.msra.mxu0 %v693
    %966 = vmatprep.subr.bf16.mxu0 %v687
    %967 = vmatpush1.bf16.msra.mxu0 %v686
    %968 = vmatprep.subr.bf16.mxu0 %v680
    %969 = vmatpush1.bf16.msra.mxu0 %v679
    %970 = vmatprep.subr.bf16.mxu0 %v673
    %971 = vmatpush1.bf16.msra.mxu0 %v672
    %972 = vmatprep.subr.bf16.mxu0 %v666
    %973 = vmatpush1.bf16.msra.mxu0 %v665
    %974 = vmatprep.subr.bf16.mxu0 %v659
    %975 = vmatpush1.bf16.msra.mxu0 %v658
    %976 = vmatprep.subr.bf16.mxu0 %v764
    %977 = vmatpush2.bf16.msra.mxu0 %v763
    %978 = vmatprep.subr.bf16.mxu0 %v757
    %979 = vmatpush2.bf16.msra.mxu0 %v756
    %980 = vmatprep.subr.bf16.mxu0 %v750
    %981 = vmatpush2.bf16.msra.mxu0 %v749
    %982 = vmatprep.subr.bf16.mxu0 %v743
    %983 = vmatpush2.bf16.msra.mxu0 %v742
    %984 = vmatprep.subr.bf16.mxu0 %v736
    %985 = vmatpush2.bf16.msra.mxu0 %v735
    %986 = vmatprep.subr.bf16.mxu0 %v729
    %987 = vmatpush2.bf16.msra.mxu0 %v728
    %988 = vmatprep.subr.bf16.mxu0 %v722
    %989 = vmatpush2.bf16.msra.mxu0 %v721
    %990 = vmatprep.subr.bf16.mxu0 %v715
    %991 = vmatpush2.bf16.msra.mxu0 %v714
    %992 = vmatprep.mubr.bf16.mxu0 %v136
    %993 = vmatmul.mubr.bf16.gmra.mxu0 %v135
    %v994 = vpop.f32.mrf.mxu0
    %v995 = vadd.f32 %v286, %v994
    %v996 = vpop.f32.mrf.mxu0
    %v997 = vadd.f32 %v290, %v996
    %v998 = vpop.f32.mrf.mxu0
    %v999 = vpop.f32.mrf.mxu0
    %1000 = vdwg.mxu0
    %1001 = vmatprep.subr.bf16.mxu0 0
    %1002 = vmatpush1.bf16.msra.mxu0 %v709
    %1003 = vmatprep.subr.bf16.mxu0 0
    %1004 = vmatpush1.bf16.msra.mxu0 %v702
    %1005 = vmatprep.subr.bf16.mxu0 0
    %1006 = vmatpush1.bf16.msra.mxu0 %v695
    %1007 = vmatprep.subr.bf16.mxu0 0
    %1008 = vmatpush1.bf16.msra.mxu0 %v688
    %1009 = vmatprep.subr.bf16.mxu0 0
    %1010 = vmatpush1.bf16.msra.mxu0 %v681
    %1011 = vmatprep.subr.bf16.mxu0 0
    %1012 = vmatpush1.bf16.msra.mxu0 %v674
    %1013 = vmatprep.subr.bf16.mxu0 0
    %1014 = vmatpush1.bf16.msra.mxu0 %v667
    %1015 = vmatprep.subr.bf16.mxu0 0
    %1016 = vmatpush1.bf16.msra.mxu0 %v660
    %1017 = vmatprep.subr.bf16.mxu0 0
    %1018 = vmatpush2.bf16.msra.mxu0 %v765
    %1019 = vmatprep.subr.bf16.mxu0 0
    %1020 = vmatpush2.bf16.msra.mxu0 %v758
    %1021 = vmatprep.subr.bf16.mxu0 0
    %1022 = vmatpush2.bf16.msra.mxu0 %v751
    %1023 = vmatprep.subr.bf16.mxu0 0
    %1024 = vmatpush2.bf16.msra.mxu0 %v744
    %1025 = vmatprep.subr.bf16.mxu0 0
    %1026 = vmatpush2.bf16.msra.mxu0 %v737
    %1027 = vmatprep.subr.bf16.mxu0 0
    %1028 = vmatpush2.bf16.msra.mxu0 %v730
    %1029 = vmatprep.subr.bf16.mxu0 0
    %1030 = vmatpush2.bf16.msra.mxu0 %v723
    %1031 = vmatprep.subr.bf16.mxu0 0
    %1032 = vmatpush2.bf16.msra.mxu0 %v716
    %1033 = vmatprep.mubr.bf16.mxu0 %v136
    %1034 = vmatmul.mubr.bf16.gmra.mxu0 %v135
    %v1035 = vpop.f32.mrf.mxu0
    %v1036 = vadd.f32 %v294, %v1035
    %v1037 = vpop.f32.mrf.mxu0
    %v1038 = vpop.f32.mrf.mxu0
    %v1039 = vpop.f32.mrf.mxu0
    %1040 = vdwg.mxu0
    %v1041 = vtanh.pop %v913
    %v1042 = vtanh.pop %v915
    %v1043 = vtanh.pop %v954
    %v1044 = vtanh.pop %v956
    %v1045 = vtanh.pop %v995
    %v1046 = vtanh.pop %v997
    %v1047 = vtanh.pop %v1036
    %1048 = vst [vmem:[#allocation2] sm:$0xff] %v1041
    %1049 = vst [vmem:[#allocation2 + $0x8] sm:$0xff] %v1042
    %1050 = vst [vmem:[#allocation2 + $0x10] sm:$0xff] %v1043
    %1051 = vst [vmem:[#allocation2 + $0x18] sm:$0xff] %v1044
    %1052 = vst [vmem:[#allocation2 + $0x20] sm:$0xff] %v1045
    %1053 = vst [vmem:[#allocation2 + $0x28] sm:$0xff] %v1046
    %vm1054 = vcmask 130048
    %1055 = vst.msk [vmem:[#allocation2 + $0x30] sm:$0xff] %vm1054, %v1047
    // Predicated region
    $region22: #{tpu_custom_call.1} parent=1 // pred_check
      _
    $region23: #{tpu_custom_call.1} parent=1 // pred_check_branch
      %1057 = sbr.rel (0) target = $region25
    $region24: #{tpu_custom_call.1} parent=1 // pred_region
      %s1059 = ssub.s32 896, 896
      %1060 = vsyncadd [#allocation3], %s1059
      %s1062 = sshll.u32 [#allocation2], 4
      %s1063 = int_to_ptr.vmem [resolvable:$true] %s1062
      %1065 = dma.vmem_to_hbm [thread:$0]  %s1063, 896, %s5, [#allocation3]
    $region25: #{tpu_custom_call.1} parent=1 // pred_fallthru
      _
    // Predicated region
    $region26: #{tpu_custom_call.1} parent=1 // pred_check
      _
    $region27: #{tpu_custom_call.1} parent=1 // pred_check_branch
      %1067 = sbr.rel (0) target = $region29
    $region28: #{tpu_custom_call.1} parent=1 // pred_region
      %1068 = dma.done [#allocation3], 896
    $region29: #{tpu_custom_call.1} parent=1 // pred_fallthru
      _
    %1069 = vsyncpa [#allocation3], 1

</llo_original>
